<compile_context>
chip_gen: v6e
topology: v6e:2x2x1
jax: 0.10.0
libtpu: 0.0.40
codegen_flags: <defaults>
</compile_context>

<pallas_src>
import jax
import jax.numpy as jnp
from jax.experimental import pallas as pl
from jax.experimental.pallas import tpu as pltpu


def _kernel(x_ref, wbbT_ref, bbb_ref, w1T_ref, b1_ref, w2T_ref, b2_ref,
            w3T_ref, b3_ref, out_ref):
    # x_ref: (tile_n, TF) f32 -- nodes on sublanes, folded time*feature on lanes.
    # bf16 cast is done in-kernel (VPU has slack) to avoid a separate XLA cast pass.
    x = x_ref[...].astype(jnp.bfloat16)

    # ---- dynamic_backbone (synthetic): folded temporal-mean Linear -> tanh ----
    # Wbb_fold^T (D, TF) contracted with x (tile_n, TF) on last dims -> (D, tile_n);
    # the MXU handles the implicit x^T, no in-kernel transpose.
    h = jax.lax.dot_general(
        wbbT_ref[...], x,
        dimension_numbers=(((1,), (1,)), ((), ())),
        preferred_element_type=jnp.float32)                        # (D, tile_n) f32
    h = jnp.tanh(h + bbb_ref[...])

    # ---- MLPClassifier head: fc1 -> ReLU -> (dropout=id) -> fc2 -> ReLU -> fc3 ----
    h = jnp.dot(w1T_ref[...], h.astype(jnp.bfloat16),
                preferred_element_type=jnp.float32) + b1_ref[...]  # (H1, tile_n)
    h = jnp.maximum(h, 0.0)
    # TODO(synk): if a v7x bundle dump shows the MXU-push (vex) slot binding, move the
    #             tiny fc2/fc3 matmuls onto an unrolled VPU FMA chain over K.
    h = jnp.dot(w2T_ref[...], h.astype(jnp.bfloat16),
                preferred_element_type=jnp.float32) + b2_ref[...]  # (H2, tile_n)
    h = jnp.maximum(h, 0.0)
    h = jnp.dot(w3T_ref[...], h.astype(jnp.bfloat16),
                preferred_element_type=jnp.float32) + b3_ref[...]  # (C, tile_n)
    out_ref[...] = h                                               # lane-dense store


def temporal_node_classifier(x, params, *, tile_n=8192):
    """x: f32[N, T, F] -> logits f32[N, C]."""
    N, T, F = x.shape
    wbb, bbb, w1, b1, w2, b2, w3, b3 = params
    D, H1, H2, C = wbb.shape[1], w1.shape[1], w2.shape[1], w3.shape[1]
    TF = T * F

    # ---- wrapper-side (XLA) weight folding / transposition: tiny one-off ops ----
    wbb_fold = jnp.tile(wbb, (T, 1)) / jnp.float32(T)              # (TF, D)
    wbbT = wbb_fold.T.astype(jnp.bfloat16)                         # (D, TF)
    w1T = w1.T.astype(jnp.bfloat16)                                # (H1, D)
    w2T = w2.T.astype(jnp.bfloat16)                                # (H2, H1)
    w3T = w3.T.astype(jnp.bfloat16)                                # (C, H2)
    b0c = bbb.reshape(D, 1).astype(jnp.float32)
    b1c = b1.reshape(H1, 1).astype(jnp.float32)
    b2c = b2.reshape(H2, 1).astype(jnp.float32)
    b3c = b3.reshape(C, 1).astype(jnp.float32)

    # x stays f32 in HBM; contiguous-dim collapse is a free reshape (no copy, no pad).
    x2 = x.reshape(N, TF)

    # ---- tile sizing: lane-aligned node tiles; ragged edge handled by Pallas masking ----
    n_lane = -(-N // 128) * 128                     # N rounded up to a lane multiple
    tile_eff = max(128, min((tile_n // 128) * 128, n_lane))
    if tile_eff >= n_lane and n_lane >= 256:
        # Guarantee >= 2 grid steps so the "parallel" axis shards across both v7x TCs.
        tile_eff = max(128, ((n_lane // 2) // 128) * 128)
    grid = pl.cdiv(N, tile_eff)

    # x stream BlockSpec: triple-buffer on v5e (exposed DMA), default 2 elsewhere.
    dev_kind = jax.devices()[0].device_kind.lower()
    is_v5e = ("v5e" in dev_kind) or ("v5 lite" in dev_kind) or ("v5litepod" in dev_kind)
    x_idx = lambda i: (i, 0)
    x_spec = pl.BlockSpec((tile_eff, TF), x_idx)
    if is_v5e:
        try:
            x_spec = pl.BlockSpec((tile_eff, TF), x_idx, pipeline_mode=pl.Buffered(3))
        except TypeError:
            pass  # older jax without pipeline_mode support; keep default buffering

    full = lambda shape: pl.BlockSpec(shape, lambda i: (0,) * len(shape))

    out_t = pl.pallas_call(
        _kernel,
        out_shape=jax.ShapeDtypeStruct((C, N), jnp.float32),
        grid_spec=pltpu.PrefetchScalarGridSpec(
            num_scalar_prefetch=0,
            grid=(grid,),
            in_specs=[
                x_spec,                           # x tile (lane-dense, f32)
                full((D, TF)), full((D, 1)),      # folded backbone linear (transposed)
                full((H1, D)), full((H1, 1)),     # fc1^T
                full((H2, H1)), full((H2, 1)),    # fc2^T
                full((C, H2)), full((C, 1)),      # fc3^T
            ],
            out_specs=pl.BlockSpec((C, tile_eff), lambda i: (0, i)),
        ),
        compiler_params=pltpu.CompilerParams(
            dimension_semantics=("parallel",),
            # ~12 MiB x buffers (3x at 8192 rows) + <8 MiB intermediates; explicit limit
            # needed because v5e's default scoped VMEM is only 16 MiB.  40 MiB still
            # leaves headroom inside v7x's 64 MiB physical VMEM.
            vmem_limit_bytes=40 * 1024 * 1024),
    )(x2, wbbT, b0c, w1T, b1c, w2T, b2c, w3T, b3c)

    return out_t.T                                                 # (N, C) f32


def _reference(x, params):
    wbb, bbb, w1, b1, w2, b2, w3, b3 = params
    h = jnp.tanh(jnp.mean(x, axis=1) @ wbb + bbb)
    h = jnp.maximum(h @ w1 + b1, 0.0)
    h = jnp.maximum(h @ w2 + b2, 0.0)
    return h @ w3 + b3


if __name__ == "__main__":
    # Small, deterministic shapes consistent with the module:
    #   N nodes, T time steps, F raw features; args.output_dim=D; num_classes=C.
    N, T, F = 128, 8, 16
    D = 32            # args.output_dim
    C = 4             # num_classes
    H1, H2 = 80, 10   # MLPClassifier hidden dims

    key = jax.random.PRNGKey(0)
    ks = jax.random.split(key, 9)
    x = jax.random.normal(ks[0], (N, T, F), dtype=jnp.float32)

    scale = 0.1
    params = (
        scale * jax.random.normal(ks[1], (F, D), dtype=jnp.float32),
        scale * jax.random.normal(ks[2], (1, D), dtype=jnp.float32),
        scale * jax.random.normal(ks[3], (D, H1), dtype=jnp.float32),
        scale * jax.random.normal(ks[4], (1, H1), dtype=jnp.float32),
        scale * jax.random.normal(ks[5], (H1, H2), dtype=jnp.float32),
        scale * jax.random.normal(ks[6], (1, H2), dtype=jnp.float32),
        scale * jax.random.normal(ks[7], (H2, C), dtype=jnp.float32),
        scale * jax.random.normal(ks[8], (1, C), dtype=jnp.float32),
    )

    out = temporal_node_classifier(x, params)
    out = jax.block_until_ready(out)

    ref = _reference(x, params)
    assert out.shape == (N, C)
    # bf16 MXU operands (f32 accumulation) -> loosened tolerance vs the f32 reference.
    assert jnp.allclose(out, ref, atol=2e-2, rtol=2e-2), "mismatch vs JAX reference"
    print("KERNEL_OK")
</pallas_src>

<mosaic_0001>
module attributes {stable_mosaic.version = 11 : i64} {
  func.func @_kernel(%arg0: i32, %arg1: memref<128x128xf32, #tpu.memory_space<vmem>>, %arg2: memref<32x128xbf16, #tpu.memory_space<vmem>>, %arg3: memref<32x1xf32, #tpu.memory_space<vmem>>, %arg4: memref<80x32xbf16, #tpu.memory_space<vmem>>, %arg5: memref<80x1xf32, #tpu.memory_space<vmem>>, %arg6: memref<10x80xbf16, #tpu.memory_space<vmem>>, %arg7: memref<10x1xf32, #tpu.memory_space<vmem>>, %arg8: memref<4x10xbf16, #tpu.memory_space<vmem>>, %arg9: memref<4x1xf32, #tpu.memory_space<vmem>>, %arg10: memref<4x128xf32, #tpu.memory_space<vmem>>) attributes {dimension_semantics = [#tpu.dimension_semantics<parallel>], iteration_bounds = array<i64: 1>, scalar_prefetch = 0 : i64, scratch_operands = 0 : i64, tpu.core_type = #tpu.core_type<tc>, window_params = [{transform_indices = @transform_0, window_bounds = array<i64: 128, 128>}, {pipeline_mode = #tpu.pipeline_mode<synchronous>, transform_indices = @transform_1, window_bounds = array<i64: 32, 128>}, {pipeline_mode = #tpu.pipeline_mode<synchronous>, transform_indices = @transform_2, window_bounds = array<i64: 32, 1>}, {pipeline_mode = #tpu.pipeline_mode<synchronous>, transform_indices = @transform_3, window_bounds = array<i64: 80, 32>}, {pipeline_mode = #tpu.pipeline_mode<synchronous>, transform_indices = @transform_4, window_bounds = array<i64: 80, 1>}, {pipeline_mode = #tpu.pipeline_mode<synchronous>, transform_indices = @transform_5, window_bounds = array<i64: 10, 80>}, {pipeline_mode = #tpu.pipeline_mode<synchronous>, transform_indices = @transform_6, window_bounds = array<i64: 10, 1>}, {pipeline_mode = #tpu.pipeline_mode<synchronous>, transform_indices = @transform_7, window_bounds = array<i64: 4, 10>}, {pipeline_mode = #tpu.pipeline_mode<synchronous>, transform_indices = @transform_8, window_bounds = array<i64: 4, 1>}, {transform_indices = @transform_9, window_bounds = array<i64: 4, 128>}]} {
    %c0 = arith.constant 0 : index
    %c0_0 = arith.constant 0 : index
    %0 = vector.load %arg1[%c0, %c0_0] : memref<128x128xf32, #tpu.memory_space<vmem>>, vector<128x128xf32>
    %1 = arith.truncf %0 : vector<128x128xf32> to vector<128x128xbf16>
    %c0_1 = arith.constant 0 : index
    %c0_2 = arith.constant 0 : index
    %2 = vector.load %arg2[%c0_1, %c0_2] : memref<32x128xbf16, #tpu.memory_space<vmem>>, vector<32x128xbf16>
    %cst = arith.constant dense<0.000000e+00> : vector<32x128xf32>
    %3 = tpu.matmul %2, %1, %cst {dimension_numbers = #tpu.dot_dimension_numbers<[1], [1], [0], [0], [0, 0, 1, 0], [], []>} : vector<32x128xbf16>, vector<128x128xbf16>, vector<32x128xf32> -> vector<32x128xf32>
    %c0_3 = arith.constant 0 : index
    %c0_4 = arith.constant 0 : index
    %4 = vector.load %arg3[%c0_3, %c0_4] : memref<32x1xf32, #tpu.memory_space<vmem>>, vector<32x1xf32>
    %5 = vector.broadcast %4 : vector<32x1xf32> to vector<32x128xf32>
    %6 = arith.addf %3, %5 : vector<32x128xf32>
    %7 = math.tanh %6 : vector<32x128xf32>
    %c0_5 = arith.constant 0 : index
    %c0_6 = arith.constant 0 : index
    %8 = vector.load %arg4[%c0_5, %c0_6] : memref<80x32xbf16, #tpu.memory_space<vmem>>, vector<80x32xbf16>
    %9 = arith.truncf %7 : vector<32x128xf32> to vector<32x128xbf16>
    %cst_7 = arith.constant dense<0.000000e+00> : vector<80x128xf32>
    %10 = tpu.matmul %8, %9, %cst_7 {dimension_numbers = #tpu.dot_dimension_numbers<[1], [0], [0], [1], [0, 0, 1, 1], [], []>} : vector<80x32xbf16>, vector<32x128xbf16>, vector<80x128xf32> -> vector<80x128xf32>
    %c0_8 = arith.constant 0 : index
    %c0_9 = arith.constant 0 : index
    %11 = vector.load %arg5[%c0_8, %c0_9] : memref<80x1xf32, #tpu.memory_space<vmem>>, vector<80x1xf32>
    %12 = vector.broadcast %11 : vector<80x1xf32> to vector<80x128xf32>
    %13 = arith.addf %10, %12 : vector<80x128xf32>
    %cst_10 = arith.constant 0.000000e+00 : f32
    %14 = vector.broadcast %cst_10 : f32 to vector<80x128xf32>
    %15 = arith.maximumf %13, %14 : vector<80x128xf32>
    %c0_11 = arith.constant 0 : index
    %c0_12 = arith.constant 0 : index
    %16 = vector.load %arg6[%c0_11, %c0_12] : memref<10x80xbf16, #tpu.memory_space<vmem>>, vector<10x80xbf16>
    %17 = arith.truncf %15 : vector<80x128xf32> to vector<80x128xbf16>
    %cst_13 = arith.constant dense<0.000000e+00> : vector<10x128xf32>
    %18 = tpu.matmul %16, %17, %cst_13 {dimension_numbers = #tpu.dot_dimension_numbers<[1], [0], [0], [1], [0, 0, 1, 1], [], []>} : vector<10x80xbf16>, vector<80x128xbf16>, vector<10x128xf32> -> vector<10x128xf32>
    %c0_14 = arith.constant 0 : index
    %c0_15 = arith.constant 0 : index
    %19 = vector.load %arg7[%c0_14, %c0_15] : memref<10x1xf32, #tpu.memory_space<vmem>>, vector<10x1xf32>
    %20 = vector.broadcast %19 : vector<10x1xf32> to vector<10x128xf32>
    %21 = arith.addf %18, %20 : vector<10x128xf32>
    %cst_16 = arith.constant 0.000000e+00 : f32
    %22 = vector.broadcast %cst_16 : f32 to vector<10x128xf32>
    %23 = arith.maximumf %21, %22 : vector<10x128xf32>
    %c0_17 = arith.constant 0 : index
    %c0_18 = arith.constant 0 : index
    %24 = vector.load %arg8[%c0_17, %c0_18] : memref<4x10xbf16, #tpu.memory_space<vmem>>, vector<4x10xbf16>
    %25 = arith.truncf %23 : vector<10x128xf32> to vector<10x128xbf16>
    %cst_19 = arith.constant dense<0.000000e+00> : vector<4x128xf32>
    %26 = tpu.matmul %24, %25, %cst_19 {dimension_numbers = #tpu.dot_dimension_numbers<[1], [0], [0], [1], [0, 0, 1, 1], [], []>} : vector<4x10xbf16>, vector<10x128xbf16>, vector<4x128xf32> -> vector<4x128xf32>
    %c0_20 = arith.constant 0 : index
    %c0_21 = arith.constant 0 : index
    %27 = vector.load %arg9[%c0_20, %c0_21] : memref<4x1xf32, #tpu.memory_space<vmem>>, vector<4x1xf32>
    %28 = vector.broadcast %27 : vector<4x1xf32> to vector<4x128xf32>
    %29 = arith.addf %26, %28 : vector<4x128xf32>
    %c0_22 = arith.constant 0 : index
    %c0_23 = arith.constant 0 : index
    %30 = vector.load %arg10[%c0_22, %c0_23] : memref<4x128xf32, #tpu.memory_space<vmem>>, vector<4x128xf32>
    tpu.vector_store %arg10[%c0_22, %c0_23], %29 {strides = array<i32>} : memref<4x128xf32, #tpu.memory_space<vmem>>, vector<4x128xf32>,
    return
  }
  func.func @transform_0(%arg0: i32) -> (i32, i32) {
    %c0_i32 = arith.constant 0 : i32
    %c0_i32_0 = arith.constant 0 : i32
    return %arg0, %c0_i32 : i32, i32
  }
  func.func @transform_1(%arg0: i32) -> (i32, i32) {
    %c0_i32 = arith.constant 0 : i32
    %c0_i32_0 = arith.constant 0 : i32
    %c0_i32_1 = arith.constant 0 : i32
    return %c0_i32, %c0_i32_0 : i32, i32
  }
  func.func @transform_2(%arg0: i32) -> (i32, i32) {
    %c0_i32 = arith.constant 0 : i32
    %c0_i32_0 = arith.constant 0 : i32
    %c0_i32_1 = arith.constant 0 : i32
    return %c0_i32, %c0_i32_0 : i32, i32
  }
  func.func @transform_3(%arg0: i32) -> (i32, i32) {
    %c0_i32 = arith.constant 0 : i32
    %c0_i32_0 = arith.constant 0 : i32
    %c0_i32_1 = arith.constant 0 : i32
    return %c0_i32, %c0_i32_0 : i32, i32
  }
  func.func @transform_4(%arg0: i32) -> (i32, i32) {
    %c0_i32 = arith.constant 0 : i32
    %c0_i32_0 = arith.constant 0 : i32
    %c0_i32_1 = arith.constant 0 : i32
    return %c0_i32, %c0_i32_0 : i32, i32
  }
  func.func @transform_5(%arg0: i32) -> (i32, i32) {
    %c0_i32 = arith.constant 0 : i32
    %c0_i32_0 = arith.constant 0 : i32
    %c0_i32_1 = arith.constant 0 : i32
    return %c0_i32, %c0_i32_0 : i32, i32
  }
  func.func @transform_6(%arg0: i32) -> (i32, i32) {
    %c0_i32 = arith.constant 0 : i32
    %c0_i32_0 = arith.constant 0 : i32
    %c0_i32_1 = arith.constant 0 : i32
    return %c0_i32, %c0_i32_0 : i32, i32
  }
  func.func @transform_7(%arg0: i32) -> (i32, i32) {
    %c0_i32 = arith.constant 0 : i32
    %c0_i32_0 = arith.constant 0 : i32
    %c0_i32_1 = arith.constant 0 : i32
    return %c0_i32, %c0_i32_0 : i32, i32
  }
  func.func @transform_8(%arg0: i32) -> (i32, i32) {
    %c0_i32 = arith.constant 0 : i32
    %c0_i32_0 = arith.constant 0 : i32
    %c0_i32_1 = arith.constant 0 : i32
    return %c0_i32, %c0_i32_0 : i32, i32
  }
  func.func @transform_9(%arg0: i32) -> (i32, i32) {
    %c0_i32 = arith.constant 0 : i32
    %c0_i32_0 = arith.constant 0 : i32
    return %c0_i32, %arg0 : i32, i32
  }
}

</mosaic_0001>

<llo_original>
// kernel: tpu_custom_call.1
$region0: #{tpu_custom_call.1}
  #allocation0 [shape = 'u32[]', space=smem, size = 0x4, offset = 0x4, fixed_abs, tag = 'smem constant byte address 0x4 - core index']
  #allocation1 [shape = 'u32[144,128]{1,0:T(1,128)}', space=vmem, size = 0x12000, scoped, tag = 'internal scratch']
  %s0 = inlined_call_operand.vmem [shape: f32[128,128], index: 0, kind: input, shape index: {}]
  %s1 = inlined_call_operand.vmem [shape: bf16[32,128], index: 1, kind: input, shape index: {}]
  %s2 = inlined_call_operand.vmem [shape: f32[32,1], index: 2, kind: input, shape index: {}]
  %s3 = inlined_call_operand.vmem [shape: bf16[80,32], index: 3, kind: input, shape index: {}]
  %s4 = inlined_call_operand.vmem [shape: f32[80,1], index: 4, kind: input, shape index: {}]
  %s5 = inlined_call_operand.vmem [shape: bf16[10,80], index: 5, kind: input, shape index: {}]
  %s6 = inlined_call_operand.vmem [shape: f32[10,1], index: 6, kind: input, shape index: {}]
  %s7 = inlined_call_operand.vmem [shape: bf16[4,10], index: 7, kind: input, shape index: {}]
  %s8 = inlined_call_operand.vmem [shape: f32[4,1], index: 8, kind: input, shape index: {}]
  %s9 = inlined_call_operand.hbm [shape: f32[4,128], index: 9, kind: output, shape index: {}]
  %s10 = sld [smem:[#allocation0]]
  $region46: #{tpu_custom_call.1} parent=0
    _
  %s12 = ssub.s32 1, %s10
  %s13 = scalar_select 0, %s12, %s10
  $region1: #{tpu_custom_call.1} parent=0
    #allocation2 [shape = 'u8[2048]{0}', space=vmem, size = 0x800, scoped, tag = 'output window, operand 0, single buffered']
    #allocation3 [shape = 's32[1]{0}', space=sflag, size = 0x4, scoped, tag = 'scoped memory for tpu_custom_call.1']
    %14 = vsyncpa [#allocation3], 0
    // Predicated region
    $region2: #{tpu_custom_call.1} parent=1 // pred_check
      _
    $region3: #{tpu_custom_call.1} parent=1 // pred_check_branch
      %16 = sbr.rel (0) target = $region5
    $region4: #{tpu_custom_call.1} parent=1 // pred_region
      _
    $region5: #{tpu_custom_call.1} parent=1 // pred_fallthru
      _
    // Predicated region
    $region6: #{tpu_custom_call.1} parent=1 // pred_check
      _
    $region7: #{tpu_custom_call.1} parent=1 // pred_check_branch
      %18 = sbr.rel (0) target = $region9
    $region8: #{tpu_custom_call.1} parent=1 // pred_region
      _
    $region9: #{tpu_custom_call.1} parent=1 // pred_fallthru
      _
    // Predicated region
    $region10: #{tpu_custom_call.1} parent=1 // pred_check
      _
    $region11: #{tpu_custom_call.1} parent=1 // pred_check_branch
      %20 = sbr.rel (0) target = $region13
    $region12: #{tpu_custom_call.1} parent=1 // pred_region
      _
    $region13: #{tpu_custom_call.1} parent=1 // pred_fallthru
      _
    // Predicated region
    $region14: #{tpu_custom_call.1} parent=1 // pred_check
      _
    $region15: #{tpu_custom_call.1} parent=1 // pred_check_branch
      %22 = sbr.rel (0) target = $region17
    $region16: #{tpu_custom_call.1} parent=1 // pred_region
      _
    $region17: #{tpu_custom_call.1} parent=1 // pred_fallthru
      _
    // Predicated region
    $region18: #{tpu_custom_call.1} parent=1 // pred_check
      _
    $region19: #{tpu_custom_call.1} parent=1 // pred_check_branch
      %24 = sbr.rel (0) target = $region21
    $region20: #{tpu_custom_call.1} parent=1 // pred_region
      _
    $region21: #{tpu_custom_call.1} parent=1 // pred_fallthru
      _
    // Predicated region
    $region22: #{tpu_custom_call.1} parent=1 // pred_check
      _
    $region23: #{tpu_custom_call.1} parent=1 // pred_check_branch
      %26 = sbr.rel (0) target = $region25
    $region24: #{tpu_custom_call.1} parent=1 // pred_region
      _
    $region25: #{tpu_custom_call.1} parent=1 // pred_fallthru
      _
    // Predicated region
    $region26: #{tpu_custom_call.1} parent=1 // pred_check
      _
    $region27: #{tpu_custom_call.1} parent=1 // pred_check_branch
      %28 = sbr.rel (0) target = $region29
    $region28: #{tpu_custom_call.1} parent=1 // pred_region
      _
    $region29: #{tpu_custom_call.1} parent=1 // pred_fallthru
      _
    // Predicated region
    $region30: #{tpu_custom_call.1} parent=1 // pred_check
      _
    $region31: #{tpu_custom_call.1} parent=1 // pred_check_branch
      %30 = sbr.rel (0) target = $region33
    $region32: #{tpu_custom_call.1} parent=1 // pred_region
      _
    $region33: #{tpu_custom_call.1} parent=1 // pred_fallthru
      _
    // Predicated region
    $region34: #{tpu_custom_call.1} parent=1 // pred_check
      _
    $region35: #{tpu_custom_call.1} parent=1 // pred_check_branch
      %32 = sbr.rel (0) target = $region37
    $region36: #{tpu_custom_call.1} parent=1 // pred_region
      _
    $region37: #{tpu_custom_call.1} parent=1 // pred_fallthru
      _
    %v34 = vld [vmem:[%s0] sm:$0xff]
    %v35 = vld [vmem:[%s0 + $0x8] sm:$0xff]
    %v36 = vld [vmem:[%s0 + $0x10] sm:$0xff]
    %v37 = vld [vmem:[%s0 + $0x18] sm:$0xff]
    %v38 = vld [vmem:[%s0 + $0x20] sm:$0xff]
    %v39 = vld [vmem:[%s0 + $0x28] sm:$0xff]
    %v40 = vld [vmem:[%s0 + $0x30] sm:$0xff]
    %v41 = vld [vmem:[%s0 + $0x38] sm:$0xff]
    %v42 = vld [vmem:[%s0 + $0x40] sm:$0xff]
    %v43 = vld [vmem:[%s0 + $0x48] sm:$0xff]
    %v44 = vld [vmem:[%s0 + $0x50] sm:$0xff]
    %v45 = vld [vmem:[%s0 + $0x58] sm:$0xff]
    %v46 = vld [vmem:[%s0 + $0x60] sm:$0xff]
    %v47 = vld [vmem:[%s0 + $0x68] sm:$0xff]
    %v48 = vld [vmem:[%s0 + $0x70] sm:$0xff]
    %v49 = vld [vmem:[%s0 + $0x78] sm:$0xff]
    %v50 = vpack.c.bf16 %v35, %v34
    %v51 = vpack.c.bf16 %v37, %v36
    %v52 = vpack.c.bf16 %v39, %v38
    %v53 = vpack.c.bf16 %v41, %v40
    %v54 = vpack.c.bf16 %v43, %v42
    %v55 = vpack.c.bf16 %v45, %v44
    %v56 = vpack.c.bf16 %v47, %v46
    %v57 = vpack.c.bf16 %v49, %v48
    %v58 = vld [vmem:[%s1] sm:$0xf]
    %v59 = vld [vmem:[%s1 + $0x4] sm:$0xf]
    %v60 = vld [vmem:[%s1 + $0x8] sm:$0xf]
    %v61 = vld [vmem:[%s1 + $0xc] sm:$0xf]
    %v62 = vld [vmem:[%s2] sm:$0xff]
    %v63 = vld [vmem:[%s2 + $0x8] sm:$0xff]
    %v64 = vld [vmem:[%s2 + $0x10] sm:$0xff]
    %v65 = vld [vmem:[%s2 + $0x18] sm:$0xff]
    %67 = vset.pattern.permute.xlu0 0
    %68 = vperm.xlu0 %67, %v62
    %v69 = vpop.permute.xlu0 %68
    %72 = vset.pattern.permute.xlu0 0
    %73 = vperm.xlu0 %72, %v63
    %v74 = vpop.permute.xlu0 %73
    %77 = vset.pattern.permute.xlu0 0
    %78 = vperm.xlu0 %77, %v64
    %v79 = vpop.permute.xlu0 %78
    %82 = vset.pattern.permute.xlu0 0
    %83 = vperm.xlu0 %82, %v65
    %v84 = vpop.permute.xlu0 %83
    %v90 = vunpack.c.l.b16 %v58
    %v91 = vunpack.c.l.b16 %v59
    %v92 = vunpack.c.l.b16 %v60
    %v93 = vunpack.c.l.b16 %v61
    %v94 = vpack.c.b16 %v91, %v90
    %v95 = vpack.c.b16 %v93, %v92
    %98 = vmatprep.subr.bf16.mxu0 0
    %99 = vmatpush1.bf16.xpose.msra.mxu0 %v57
    %100 = vmatprep.subr.bf16.mxu0 0
    %101 = vmatpush1.bf16.xpose.msra.mxu0 %v56
    %102 = vmatprep.subr.bf16.mxu0 0
    %103 = vmatpush1.bf16.xpose.msra.mxu0 %v55
    %104 = vmatprep.subr.bf16.mxu0 0
    %105 = vmatpush1.bf16.xpose.msra.mxu0 %v54
    %106 = vmatprep.subr.bf16.mxu0 0
    %107 = vmatpush1.bf16.xpose.msra.mxu0 %v53
    %108 = vmatprep.subr.bf16.mxu0 0
    %109 = vmatpush1.bf16.xpose.msra.mxu0 %v52
    %110 = vmatprep.subr.bf16.mxu0 0
    %111 = vmatpush1.bf16.xpose.msra.mxu0 %v51
    %112 = vmatprep.subr.bf16.mxu0 0
    %113 = vmatpush1.bf16.xpose.msra.mxu0 %v50
    %114 = vmatprep.subr.bf16.mxu0 0
    %115 = vmatpush2.bf16.xpose.msra.mxu0 0
    %116 = vmatprep.subr.bf16.mxu0 0
    %117 = vmatpush2.bf16.xpose.msra.mxu0 0
    %118 = vmatprep.subr.bf16.mxu0 0
    %119 = vmatpush2.bf16.xpose.msra.mxu0 0
    %120 = vmatprep.subr.bf16.mxu0 0
    %121 = vmatpush2.bf16.xpose.msra.mxu0 0
    %122 = vmatprep.subr.bf16.mxu0 0
    %123 = vmatpush2.bf16.xpose.msra.mxu0 0
    %124 = vmatprep.subr.bf16.mxu0 0
    %125 = vmatpush2.bf16.xpose.msra.mxu0 0
    %126 = vmatprep.subr.bf16.mxu0 0
    %127 = vmatpush2.bf16.xpose.msra.mxu0 0
    %128 = vmatprep.subr.bf16.mxu0 0
    %129 = vmatpush2.bf16.xpose.msra.mxu0 0
    %130 = vmatprep.mubr.bf16.mxu0 0
    %131 = vmatmul.mubr.bf16.gmra.mxu0 %v94
    %v132 = vpop.f32.mrf.mxu0
    %v133 = vadd.f32 %v69, %v132
    %v134 = vpop.f32.mrf.mxu0
    %v135 = vpop.f32.mrf.mxu0
    %v136 = vadd.f32 %v74, %v135
    %v137 = vpop.f32.mrf.mxu0
    %138 = vmatprep.mubr.bf16.mxu0 0
    %139 = vmatmul.mubr.bf16.gmra.mxu0 %v95
    %v140 = vpop.f32.mrf.mxu0
    %v141 = vadd.f32 %v79, %v140
    %v142 = vpop.f32.mrf.mxu0
    %v143 = vpop.f32.mrf.mxu0
    %v144 = vadd.f32 %v84, %v143
    %v145 = vpop.f32.mrf.mxu0
    %146 = vdwg.mxu0
    %v147 = vtanh.pop %v133
    %v148 = vtanh.pop %v136
    %v149 = vtanh.pop %v141
    %v150 = vtanh.pop %v144
    %v151 = vld [vmem:[%s3] sm:$0xf]
    %v152 = vld [vmem:[%s3 + $0x4] sm:$0xf]
    %v153 = vld [vmem:[%s3 + $0x8] sm:$0xf]
    %v154 = vld [vmem:[%s3 + $0xc] sm:$0xf]
    %v155 = vld [vmem:[%s3 + $0x10] sm:$0xf]
    %v156 = vld [vmem:[%s3 + $0x14] sm:$0xf]
    %v157 = vld [vmem:[%s3 + $0x18] sm:$0xf]
    %v158 = vld [vmem:[%s3 + $0x1c] sm:$0xf]
    %v159 = vld [vmem:[%s3 + $0x20] sm:$0xf]
    %v160 = vld [vmem:[%s3 + $0x24] sm:$0xf]
    %v161 = vpack.c.bf16 %v148, %v147
    %v162 = vpack.c.bf16 %v150, %v149
    %v163 = vld [vmem:[%s4] sm:$0xff]
    %v164 = vld [vmem:[%s4 + $0x8] sm:$0xff]
    %v165 = vld [vmem:[%s4 + $0x10] sm:$0xff]
    %v166 = vld [vmem:[%s4 + $0x18] sm:$0xff]
    %v167 = vld [vmem:[%s4 + $0x20] sm:$0xff]
    %v168 = vld [vmem:[%s4 + $0x28] sm:$0xff]
    %v169 = vld [vmem:[%s4 + $0x30] sm:$0xff]
    %v170 = vld [vmem:[%s4 + $0x38] sm:$0xff]
    %v171 = vld [vmem:[%s4 + $0x40] sm:$0xff]
    %v172 = vld [vmem:[%s4 + $0x48] sm:$0xff]
    %174 = vset.pattern.permute.xlu0 0
    %175 = vperm.xlu0 %174, %v163
    %v176 = vpop.permute.xlu0 %175
    %179 = vset.pattern.permute.xlu0 0
    %180 = vperm.xlu0 %179, %v164
    %v181 = vpop.permute.xlu0 %180
    %184 = vset.pattern.permute.xlu0 0
    %185 = vperm.xlu0 %184, %v165
    %v186 = vpop.permute.xlu0 %185
    %189 = vset.pattern.permute.xlu0 0
    %190 = vperm.xlu0 %189, %v166
    %v191 = vpop.permute.xlu0 %190
    %194 = vset.pattern.permute.xlu0 0
    %195 = vperm.xlu0 %194, %v167
    %v196 = vpop.permute.xlu0 %195
    %199 = vset.pattern.permute.xlu0 0
    %200 = vperm.xlu0 %199, %v168
    %v201 = vpop.permute.xlu0 %200
    %204 = vset.pattern.permute.xlu0 0
    %205 = vperm.xlu0 %204, %v169
    %v206 = vpop.permute.xlu0 %205
    %209 = vset.pattern.permute.xlu0 0
    %210 = vperm.xlu0 %209, %v170
    %v211 = vpop.permute.xlu0 %210
    %214 = vset.pattern.permute.xlu0 0
    %215 = vperm.xlu0 %214, %v171
    %v216 = vpop.permute.xlu0 %215
    %219 = vset.pattern.permute.xlu0 0
    %220 = vperm.xlu0 %219, %v172
    %v221 = vpop.permute.xlu0 %220
    %v233 = vunpack.c.l.b16 %v151
    %v234 = vunpack.c.l.b16 %v152
    %v235 = vunpack.c.l.b16 %v153
    %v236 = vunpack.c.l.b16 %v154
    %v237 = vunpack.c.l.b16 %v155
    %v238 = vunpack.c.l.b16 %v156
    %v239 = vunpack.c.l.b16 %v157
    %v240 = vunpack.c.l.b16 %v158
    %v241 = vunpack.c.l.b16 %v159
    %v242 = vunpack.c.l.b16 %v160
    %v243 = vpack.c.b16 %v234, %v233
    %v244 = vpack.c.b16 %v236, %v235
    %v245 = vpack.c.b16 %v238, %v237
    %v246 = vpack.c.b16 %v240, %v239
    %v247 = vpack.c.b16 %v242, %v241
    %vm248 = vcmask 261120
    %v250 = vsel %vm248, %v243, 0
    %v253 = vsel %vm248, %v244, 0
    %v256 = vsel %vm248, %v245, 0
    %v259 = vsel %vm248, %v246, 0
    %v262 = vsel %vm248, %v247, 0
    %264 = vmatprep.subr.bf16.mxu0 0
    %265 = vmatpush1.bf16.msra.mxu0 0
    %266 = vmatprep.subr.bf16.mxu0 0
    %267 = vmatpush1.bf16.msra.mxu0 0
    %268 = vmatprep.subr.bf16.mxu0 0
    %269 = vmatpush1.bf16.msra.mxu0 0
    %270 = vmatprep.subr.bf16.mxu0 0
    %271 = vmatpush1.bf16.msra.mxu0 0
    %272 = vmatprep.subr.bf16.mxu0 0
    %273 = vmatpush1.bf16.msra.mxu0 0
    %274 = vmatprep.subr.bf16.mxu0 0
    %275 = vmatpush1.bf16.msra.mxu0 0
    %276 = vmatprep.subr.bf16.mxu0 0
    %277 = vmatpush1.bf16.msra.mxu0 %v162
    %278 = vmatprep.subr.bf16.mxu0 0
    %279 = vmatpush1.bf16.msra.mxu0 %v161
    %280 = vmatprep.subr.bf16.mxu0 0
    %281 = vmatpush2.bf16.msra.mxu0 0
    %282 = vmatprep.subr.bf16.mxu0 0
    %283 = vmatpush2.bf16.msra.mxu0 0
    %284 = vmatprep.subr.bf16.mxu0 0
    %285 = vmatpush2.bf16.msra.mxu0 0
    %286 = vmatprep.subr.bf16.mxu0 0
    %287 = vmatpush2.bf16.msra.mxu0 0
    %288 = vmatprep.subr.bf16.mxu0 0
    %289 = vmatpush2.bf16.msra.mxu0 0
    %290 = vmatprep.subr.bf16.mxu0 0
    %291 = vmatpush2.bf16.msra.mxu0 0
    %292 = vmatprep.subr.bf16.mxu0 0
    %293 = vmatpush2.bf16.msra.mxu0 0
    %294 = vmatprep.subr.bf16.mxu0 0
    %295 = vmatpush2.bf16.msra.mxu0 0
    %296 = vmatprep.mubr.bf16.mxu0 0
    %297 = vmatmul.mubr.bf16.gmra.mxu0 %v250
    %v298 = vpop.f32.mrf.mxu0
    %v299 = vadd.f32 %v176, %v298
    %v300 = vpop.f32.mrf.mxu0
    %v301 = vpop.f32.mrf.mxu0
    %v302 = vadd.f32 %v181, %v301
    %v303 = vpop.f32.mrf.mxu0
    %304 = vmatprep.mubr.bf16.mxu0 0
    %305 = vmatmul.mubr.bf16.gmra.mxu0 %v253
    %v306 = vpop.f32.mrf.mxu0
    %v307 = vadd.f32 %v186, %v306
    %v308 = vpop.f32.mrf.mxu0
    %v309 = vpop.f32.mrf.mxu0
    %v310 = vadd.f32 %v191, %v309
    %v311 = vpop.f32.mrf.mxu0
    %312 = vmatprep.mubr.bf16.mxu0 0
    %313 = vmatmul.mubr.bf16.gmra.mxu0 %v256
    %v314 = vpop.f32.mrf.mxu0
    %v315 = vadd.f32 %v196, %v314
    %v316 = vpop.f32.mrf.mxu0
    %v317 = vpop.f32.mrf.mxu0
    %v318 = vadd.f32 %v201, %v317
    %v319 = vpop.f32.mrf.mxu0
    %320 = vmatprep.mubr.bf16.mxu0 0
    %321 = vmatmul.mubr.bf16.gmra.mxu0 %v259
    %v322 = vpop.f32.mrf.mxu0
    %v323 = vadd.f32 %v206, %v322
    %v324 = vpop.f32.mrf.mxu0
    %v325 = vpop.f32.mrf.mxu0
    %v326 = vadd.f32 %v211, %v325
    %v327 = vpop.f32.mrf.mxu0
    %328 = vmatprep.mubr.bf16.mxu0 0
    %329 = vmatmul.mubr.bf16.gmra.mxu0 %v262
    %v330 = vpop.f32.mrf.mxu0
    %v331 = vadd.f32 %v216, %v330
    %v332 = vpop.f32.mrf.mxu0
    %v333 = vpop.f32.mrf.mxu0
    %v334 = vadd.f32 %v221, %v333
    %v335 = vpop.f32.mrf.mxu0
    %336 = vdwg.mxu0
    %v337 = vmax.f32 %v299, 0.0
    %v338 = vmax.f32 %v302, 0.0
    %v339 = vmax.f32 %v307, 0.0
    %v340 = vmax.f32 %v310, 0.0
    %v341 = vmax.f32 %v315, 0.0
    %v342 = vmax.f32 %v318, 0.0
    %v343 = vmax.f32 %v323, 0.0
    %v344 = vmax.f32 %v326, 0.0
    %v345 = vmax.f32 %v331, 0.0
    %v346 = vmax.f32 %v334, 0.0
    %v347 = vld [vmem:[%s5] sm:$0xf]
    %v348 = vld [vmem:[%s5 + $0x4] sm:$0x1]
    %v349 = vpack.c.bf16 %v338, %v337
    %v350 = vpack.c.bf16 %v340, %v339
    %v351 = vpack.c.bf16 %v342, %v341
    %v352 = vpack.c.bf16 %v344, %v343
    %v353 = vpack.c.bf16 %v346, %v345
    %v354 = vld [vmem:[%s6] sm:$0xff]
    %v355 = vld [vmem:[%s6 + $0x8] sm:$0x3]
    %357 = vset.pattern.permute.xlu0 0
    %358 = vperm.xlu0 %357, %v354
    %v359 = vpop.permute.xlu0 %358
    %362 = vset.pattern.permute.xlu0 0
    %363 = vperm.xlu0 %362, %v355
    %v364 = vpop.permute.xlu0 %363
    %v368 = vunpack.c.l.b16 %v347
    %v369 = vunpack.c.l.b16 %v348
    %v370 = vpack.c.b16 %v369, %v368
    %vm371 = vcmask 654336
    %v373 = vsel %vm371, %v370, 0
    %375 = vmatprep.subr.bf16.mxu0 0
    %376 = vmatpush1.bf16.msra.mxu0 0
    %377 = vmatprep.subr.bf16.mxu0 0
    %378 = vmatpush1.bf16.msra.mxu0 0
    %379 = vmatprep.subr.bf16.mxu0 0
    %380 = vmatpush1.bf16.msra.mxu0 0
    %381 = vmatprep.subr.bf16.mxu0 0
    %382 = vmatpush1.bf16.msra.mxu0 %v353
    %383 = vmatprep.subr.bf16.mxu0 0
    %384 = vmatpush1.bf16.msra.mxu0 %v352
    %385 = vmatprep.subr.bf16.mxu0 0
    %386 = vmatpush1.bf16.msra.mxu0 %v351
    %387 = vmatprep.subr.bf16.mxu0 0
    %388 = vmatpush1.bf16.msra.mxu0 %v350
    %389 = vmatprep.subr.bf16.mxu0 0
    %390 = vmatpush1.bf16.msra.mxu0 %v349
    %391 = vmatprep.subr.bf16.mxu0 0
    %392 = vmatpush2.bf16.msra.mxu0 0
    %393 = vmatprep.subr.bf16.mxu0 0
    %394 = vmatpush2.bf16.msra.mxu0 0
    %395 = vmatprep.subr.bf16.mxu0 0
    %396 = vmatpush2.bf16.msra.mxu0 0
    %397 = vmatprep.subr.bf16.mxu0 0
    %398 = vmatpush2.bf16.msra.mxu0 0
    %399 = vmatprep.subr.bf16.mxu0 0
    %400 = vmatpush2.bf16.msra.mxu0 0
    %401 = vmatprep.subr.bf16.mxu0 0
    %402 = vmatpush2.bf16.msra.mxu0 0
    %403 = vmatprep.subr.bf16.mxu0 0
    %404 = vmatpush2.bf16.msra.mxu0 0
    %405 = vmatprep.subr.bf16.mxu0 0
    %406 = vmatpush2.bf16.msra.mxu0 0
    %407 = vmatprep.mubr.bf16.mxu0 0
    %408 = vmatmul.mubr.bf16.gmra.mxu0 %v373
    %v409 = vpop.f32.mrf.mxu0
    %v410 = vadd.f32 %v359, %v409
    %v411 = vpop.f32.mrf.mxu0
    %v412 = vpop.f32.mrf.mxu0
    %v413 = vadd.f32 %v364, %v412
    %v414 = vpop.f32.mrf.mxu0
    %415 = vdwg.mxu0
    %v416 = vmax.f32 %v410, 0.0
    %v417 = vmax.f32 %v413, 0.0
    %v418 = vld [vmem:[%s7] sm:$0x3]
    %v419 = vpack.c.bf16 %v417, %v416
    %v420 = vld [vmem:[%s8] sm:$0xf]
    %422 = vset.pattern.permute.xlu0 0
    %423 = vperm.xlu0 %422, %v420
    %v424 = vpop.permute.xlu0 %423
    %vm426 = vcmask 80896
    %v428 = vsel %vm426, %v418, 0
    %vm430 = vcmask 1044480
    %v432 = vsel %vm430, %v419, 0
    %434 = vmatprep.subr.bf16.mxu0 0
    %435 = vmatpush1.bf16.msra.mxu0 0
    %436 = vmatprep.subr.bf16.mxu0 0
    %437 = vmatpush1.bf16.msra.mxu0 0
    %438 = vmatprep.subr.bf16.mxu0 0
    %439 = vmatpush1.bf16.msra.mxu0 0
    %440 = vmatprep.subr.bf16.mxu0 0
    %441 = vmatpush1.bf16.msra.mxu0 0
    %442 = vmatprep.subr.bf16.mxu0 0
    %443 = vmatpush1.bf16.msra.mxu0 0
    %444 = vmatprep.subr.bf16.mxu0 0
    %445 = vmatpush1.bf16.msra.mxu0 0
    %446 = vmatprep.subr.bf16.mxu0 0
    %447 = vmatpush1.bf16.msra.mxu0 0
    %448 = vmatprep.subr.bf16.mxu0 0
    %449 = vmatpush1.bf16.msra.mxu0 %v432
    %450 = vmatprep.subr.bf16.mxu0 0
    %451 = vmatpush2.bf16.msra.mxu0 0
    %452 = vmatprep.subr.bf16.mxu0 0
    %453 = vmatpush2.bf16.msra.mxu0 0
    %454 = vmatprep.subr.bf16.mxu0 0
    %455 = vmatpush2.bf16.msra.mxu0 0
    %456 = vmatprep.subr.bf16.mxu0 0
    %457 = vmatpush2.bf16.msra.mxu0 0
    %458 = vmatprep.subr.bf16.mxu0 0
    %459 = vmatpush2.bf16.msra.mxu0 0
    %460 = vmatprep.subr.bf16.mxu0 0
    %461 = vmatpush2.bf16.msra.mxu0 0
    %462 = vmatprep.subr.bf16.mxu0 0
    %463 = vmatpush2.bf16.msra.mxu0 0
    %464 = vmatprep.subr.bf16.mxu0 0
    %465 = vmatpush2.bf16.msra.mxu0 0
    %466 = vmatprep.mubr.bf16.mxu0 0
    %467 = vmatmul.mubr.bf16.gmra.mxu0 %v428
    %v468 = vpop.f32.mrf.mxu0
    %v469 = vadd.f32 %v424, %v468
    %v470 = vpop.f32.mrf.mxu0
    %v471 = vpop.f32.mrf.mxu0
    %v472 = vpop.f32.mrf.mxu0
    %473 = vdwg.mxu0
    %474 = vst [vmem:[#allocation2] sm:$0xf] %v469
    // Predicated region
    $region38: #{tpu_custom_call.1} parent=1 // pred_check
      _
    $region39: #{tpu_custom_call.1} parent=1 // pred_check_branch
      %476 = sbr.rel (0) target = $region41
    $region40: #{tpu_custom_call.1} parent=1 // pred_region
      %s478 = ssub.s32 64, 64
      %479 = vsyncadd [#allocation3], %s478
      %s481 = sshll.u32 [#allocation2], 4
      %s482 = int_to_ptr.vmem [resolvable:$true] %s481
      %484 = dma.vmem_to_hbm [thread:$0]  %s482, 64, %s9, [#allocation3]
    $region41: #{tpu_custom_call.1} parent=1 // pred_fallthru
      _
    // Predicated region
    $region42: #{tpu_custom_call.1} parent=1 // pred_check
      _
    $region43: #{tpu_custom_call.1} parent=1 // pred_check_branch
      %486 = sbr.rel (0) target = $region45
    $region44: #{tpu_custom_call.1} parent=1 // pred_region
      %487 = dma.done [#allocation3], 64
    $region45: #{tpu_custom_call.1} parent=1 // pred_fallthru
      _
    %488 = vsyncpa [#allocation3], 1

</llo_original>
